<compile_context>
chip_gen: v7x
topology: tpu7x:2x2x1
jax: 0.10.0
libtpu: 0.0.40
codegen_flags: <defaults>
</compile_context>

<pallas_src>
import jax
import jax.numpy as jnp
from jax.experimental import pallas as pl
from jax.experimental.pallas import tpu as pltpu


def _round_up(n, m):
    return ((n + m - 1) // m) * m


def _tpu_generation():
    """Best-effort TPU generation tag: 'v5', 'v6', 'v7' or 'unknown'."""
    try:
        kind = jax.devices()[0].device_kind.lower()
    except Exception:
        return "unknown"
    for g in ("v7", "v6", "v5", "v4"):
        if g in kind:
            return g
    return "unknown"


def _vmem_capacity_bytes(gen):
    try:
        return int(pltpu.get_tpu_info().vmem_capacity_bytes)
    except Exception:
        # v7x has 64 MiB per TensorCore; v5e/v6e have 128 MiB.
        return (64 << 20) if gen == "v7" else (128 << 20)


# ---------------------------------------------------------------------------
# Kernels
# ---------------------------------------------------------------------------
def _resident_kernel(x_ref, w1_ref, b1_ref, w2_ref, b2_ref, o_ref):
    # Whole weight set resident in VMEM: one fused Linear -> ReLU -> Linear.
    h = jnp.dot(x_ref[...], w1_ref[...], preferred_element_type=jnp.float32)
    h = jnp.maximum(h + b1_ref[...], 0.0)                 # bias + clamp(min=0), f32
    y = jnp.dot(h.astype(w2_ref.dtype), w2_ref[...],
                preferred_element_type=jnp.float32)
    o_ref[...] = (y + b2_ref[...]).astype(o_ref.dtype)


def _streamed_kernel_f32out(x_ref, w1_ref, b1_ref, w2_ref, b2_ref, o_ref):
    # f32 output: accumulate directly into the resident output block (no scratch).
    k = pl.program_id(1)

    @pl.when(k == 0)
    def _init():
        o_ref[...] = jnp.zeros_like(o_ref)

    h = jnp.dot(x_ref[...], w1_ref[...], preferred_element_type=jnp.float32)
    h = jnp.maximum(h + b1_ref[...], 0.0)
    o_ref[...] += jnp.dot(h.astype(w2_ref.dtype), w2_ref[...],
                          preferred_element_type=jnp.float32)

    @pl.when(k == pl.num_programs(1) - 1)
    def _finalize():
        o_ref[...] += b2_ref[...]                          # b2 added exactly once


def _streamed_kernel_acc(x_ref, w1_ref, b1_ref, w2_ref, b2_ref, o_ref, acc_ref):
    # Non-f32 output: keep an f32 accumulator in scratch, cast in the epilogue.
    k = pl.program_id(1)

    @pl.when(k == 0)
    def _init():
        acc_ref[...] = jnp.zeros_like(acc_ref)

    h = jnp.dot(x_ref[...], w1_ref[...], preferred_element_type=jnp.float32)
    h = jnp.maximum(h + b1_ref[...], 0.0)
    acc_ref[...] += jnp.dot(h.astype(w2_ref.dtype), w2_ref[...],
                            preferred_element_type=jnp.float32)

    @pl.when(k == pl.num_programs(1) - 1)
    def _finalize():
        o_ref[...] = (acc_ref[...] + b2_ref[...]).astype(o_ref.dtype)


# ---------------------------------------------------------------------------
# Parameter preparation (call once; hoisted out of the per-forward path)
# ---------------------------------------------------------------------------
def prepare_params(w1, b1, w2, b2, *, mxu_dtype=jnp.bfloat16):
    """Pad + cast weights once. w1:(d_in,hidden), w2:(hidden,d_out) (x @ W layout)."""
    gen = _tpu_generation()
    # v6e/v7x MXUs are 256-wide; 128 matches v5e's 128x128 MXU.
    lane_mult = 256 if gen in ("v6", "v7") else 128

    d_in, hidden = w1.shape
    d_out = w2.shape[1]
    d_in_p = _round_up(d_in, lane_mult)
    hid_p = _round_up(hidden, lane_mult)
    d_out_p = _round_up(d_out, lane_mult)

    def pad2(a, shape, dtype):
        a = a.astype(dtype)
        if a.shape == shape:
            return a                                       # skip copy when aligned
        return jnp.zeros(shape, dtype).at[: a.shape[0], : a.shape[1]].set(a)

    w1p = pad2(w1, (d_in_p, hid_p), mxu_dtype)
    w2p = pad2(w2, (hid_p, d_out_p), mxu_dtype)
    b1p = pad2(b1.reshape(1, -1), (1, hid_p), jnp.float32)
    b2p = pad2(b2.reshape(1, -1), (1, d_out_p), jnp.float32)

    meta = dict(gen=gen, lane_mult=lane_mult, mxu_dtype=mxu_dtype,
                d_in=d_in, hidden=hidden, d_out=d_out,
                d_in_p=d_in_p, hid_p=hid_p, d_out_p=d_out_p)
    return (w1p, b1p, w2p, b2p), meta


# ---------------------------------------------------------------------------
# Forward pass
# ---------------------------------------------------------------------------
def two_layer_net_padded(x, padded_params, meta, *, block_b=None, block_h=512):
    w1p, b1p, w2p, b2p = padded_params
    gen, lane_mult = meta["gen"], meta["lane_mult"]
    mxu_dtype = meta["mxu_dtype"]
    d_in, d_out = meta["d_in"], meta["d_out"]
    d_in_p, hid_p, d_out_p = meta["d_in_p"], meta["hid_p"], meta["d_out_p"]

    B = x.shape[0]
    out_dtype = x.dtype
    out_is_f32 = jnp.dtype(out_dtype) == jnp.dtype(jnp.float32)
    e_in = jnp.dtype(mxu_dtype).itemsize
    e_out = jnp.dtype(out_dtype).itemsize

    vmem_cap = _vmem_capacity_bytes(gen)
    vmem_budget = int(0.8 * vmem_cap)
    num_cores = 2 if gen == "v7" else 1

    # --- decide weight-resident vs streamed-weights -------------------------
    weight_bytes = (d_in_p * hid_p + hid_p * d_out_p) * e_in + (hid_p + d_out_p) * 4
    resident_fixed = 2 * weight_bytes          # conservative: assume 2 pipeline bufs

    def resident_vmem(tb_):
        per_tile = tb_ * d_in_p * e_in + tb_ * d_out_p * e_out
        temp = tb_ * hid_p * (4 + e_in)        # f32 h + bf16 recast of h
        return resident_fixed + 2 * per_tile + temp + (2 << 20)

    if block_b is None:
        block_b_resident = 256
        # Streamed loop needs larger batch tiles on v6e to leave the HBM roofline;
        # v5e is already compute-bound at ~256.
        block_b_streamed = {"v6": 768, "v7": 512}.get(gen, 256)
    else:
        block_b_resident = block_b_streamed = block_b

    def pick_tb(target):
        tb_ = min(target, _round_up(B, 8))
        if num_cores > 1 and B >= 16:
            # Ensure the ("parallel") batch axis gives every TensorCore work.
            tb_ = min(tb_, _round_up(pl.cdiv(B, num_cores), 8))
        return max(8, tb_)

    tb = pick_tb(block_b_resident)
    use_resident = resident_vmem(tb) <= vmem_budget
    if not use_resident:
        tb = pick_tb(block_b_streamed)

    bp = _round_up(B, tb)

    # Pad x per call (weights already padded once in prepare_params).
    xp = x.astype(mxu_dtype)
    if xp.shape != (bp, d_in_p):
        xp = jnp.zeros((bp, d_in_p), mxu_dtype).at[:B, :d_in].set(xp)

    if use_resident:
        grid = (bp // tb,)
        in_specs = [
            pl.BlockSpec((tb, d_in_p), lambda i: (i, 0)),          # x row tile
            pl.BlockSpec((d_in_p, hid_p), lambda i: (0, 0)),       # W1, DMA'd once
            pl.BlockSpec((1, hid_p), lambda i: (0, 0)),            # b1, DMA'd once
            pl.BlockSpec((hid_p, d_out_p), lambda i: (0, 0)),      # W2, DMA'd once
            pl.BlockSpec((1, d_out_p), lambda i: (0, 0)),          # b2, DMA'd once
        ]
        out_specs = pl.BlockSpec((tb, d_out_p), lambda i: (i, 0))
        kernel = _resident_kernel
        scratch_shapes = []
        dim_sem = ("parallel",)
        vmem_bytes = resident_vmem(tb)
        weight_passes = 1
    else:
        # Streamed weights: hidden is the (last, "arbitrary") reduction axis.
        # Pick a hidden tile that divides hid_p and fits the VMEM budget.
        # TODO(synk): add a d_out (N) grid axis for very large d_out on v7x.
        th = max(lane_mult, (min(block_h, hid_p) // lane_mult) * lane_mult)
        while hid_p % th:
            th -= lane_mult

        def streamed_vmem(th_):
            per_step = (tb * d_in_p + d_in_p * th_ + th_ * d_out_p) * e_in \
                       + (th_ + d_out_p) * 4 + tb * d_out_p * e_out
            acc = 0 if out_is_f32 else tb * d_out_p * 4
            return 2 * per_step + acc + tb * th_ * (4 + e_in) + (2 << 20)

        while th > lane_mult and streamed_vmem(th) > vmem_budget:
            th -= lane_mult
            while hid_p % th:
                th -= lane_mult

        grid = (bp // tb, hid_p // th)
        in_specs = [
            pl.BlockSpec((tb, d_in_p), lambda i, k: (i, 0)),       # x row tile
            pl.BlockSpec((d_in_p, th), lambda i, k: (0, k)),       # W1 hidden tile
            pl.BlockSpec((1, th), lambda i, k: (0, k)),            # b1 hidden tile
            pl.BlockSpec((th, d_out_p), lambda i, k: (k, 0)),      # W2 hidden tile
            pl.BlockSpec((1, d_out_p), lambda i, k: (0, 0)),       # b2 (finalize)
        ]
        out_specs = pl.BlockSpec((tb, d_out_p), lambda i, k: (i, 0))
        if out_is_f32:
            kernel = _streamed_kernel_f32out
            scratch_shapes = []
        else:
            kernel = _streamed_kernel_acc
            scratch_shapes = [pltpu.VMEM((tb, d_out_p), jnp.float32)]
        dim_sem = ("parallel", "arbitrary")
        vmem_bytes = streamed_vmem(th)
        weight_passes = bp // tb                                    # re-streamed

    vmem_bytes = int(min(max(vmem_bytes, 16 << 20), int(0.85 * vmem_cap)))

    cost = pl.CostEstimate(
        flops=2 * bp * (d_in_p * hid_p + hid_p * d_out_p),
        transcendentals=0,
        bytes_accessed=bp * d_in_p * e_in
                       + weight_passes * weight_bytes
                       + bp * d_out_p * e_out,
    )

    out = pl.pallas_call(
        kernel,
        out_shape=jax.ShapeDtypeStruct((bp, d_out_p), out_dtype),
        grid_spec=pltpu.PrefetchScalarGridSpec(
            num_scalar_prefetch=0,
            grid=grid,
            in_specs=in_specs,
            out_specs=out_specs,
            scratch_shapes=scratch_shapes,
        ),
        compiler_params=pltpu.CompilerParams(
            dimension_semantics=dim_sem,
            vmem_limit_bytes=vmem_bytes,
        ),
        cost_estimate=cost,
    )(xp, w1p, b1p, w2p, b2p)

    # Strip lane/batch padding.
    return out[:B, :d_out]


def two_layer_net(x, w1, b1, w2, b2, **kwargs):
    """Convenience wrapper. For repeated calls, use prepare_params() once +
    two_layer_net_padded() so the weight padding/cast is not re-done per call."""
    padded, meta = prepare_params(w1, b1, w2, b2)
    return two_layer_net_padded(x, padded, meta, **kwargs)


if __name__ == "__main__":
    # Small demo shapes implied by TwoLayerNet(d_in, hidden_size, d_out).
    # (Correctness check only -- do NOT tune/benchmark at this size.)
    B, D_IN, HIDDEN, D_OUT = 8, 32, 64, 16

    key = jax.random.PRNGKey(0)
    kx, k1, kb1, k2, kb2 = jax.random.split(key, 5)

    x = jax.random.normal(kx, (B, D_IN), dtype=jnp.float32)

    # torch.nn.Linear-style uniform(-1/sqrt(fan_in), 1/sqrt(fan_in)) init.
    # Weights stored pre-transposed (x @ W), matching PyTorch's x @ W.T.
    lim1 = 1.0 / jnp.sqrt(jnp.float32(D_IN))
    w1 = jax.random.uniform(k1, (D_IN, HIDDEN), jnp.float32, -lim1, lim1)
    b1 = jax.random.uniform(kb1, (HIDDEN,), jnp.float32, -lim1, lim1)
    lim2 = 1.0 / jnp.sqrt(jnp.float32(HIDDEN))
    w2 = jax.random.uniform(k2, (HIDDEN, D_OUT), jnp.float32, -lim2, lim2)
    b2 = jax.random.uniform(kb2, (D_OUT,), jnp.float32, -lim2, lim2)

    # Hoist the (one-time) weight padding/cast out of the per-call path.
    padded_params, meta = prepare_params(w1, b1, w2, b2)
    y = two_layer_net_padded(x, padded_params, meta)
    jax.block_until_ready(y)
    assert y.shape == (B, D_OUT)

    # Reference matching the kernel's bf16-operand / f32-accumulation math.
    # Note: h is cast to bf16 before the second matmul (intentional precision
    # trade-off for MXU throughput).
    xb = x.astype(jnp.bfloat16).astype(jnp.float32)
    w1b = w1.astype(jnp.bfloat16).astype(jnp.float32)
    w2b = w2.astype(jnp.bfloat16).astype(jnp.float32)
    h_ref = jnp.maximum(xb @ w1b + b1, 0.0)
    y_ref_bf16 = h_ref.astype(jnp.bfloat16).astype(jnp.float32) @ w2b + b2
    assert jnp.allclose(y, y_ref_bf16, atol=1e-4, rtol=1e-4)

    # Looser check against pure-f32 forward semantics (bf16 operand error).
    y_ref_f32 = jnp.maximum(x @ w1 + b1, 0.0) @ w2 + b2
    assert jnp.allclose(y, y_ref_f32, atol=3e-2, rtol=3e-2)

    print("KERNEL_OK")
</pallas_src>

<mosaic_0001>
module attributes {stable_mosaic.version = 11 : i64} {
  func.func @_resident_kernel(%arg0: i32, %arg1: memref<8x128xbf16, #tpu.memory_space<vmem>>, %arg2: memref<128x128xbf16, #tpu.memory_space<vmem>>, %arg3: memref<1x128xf32, #tpu.memory_space<vmem>>, %arg4: memref<128x128xbf16, #tpu.memory_space<vmem>>, %arg5: memref<1x128xf32, #tpu.memory_space<vmem>>, %arg6: memref<8x128xf32, #tpu.memory_space<vmem>>) attributes {dimension_semantics = [#tpu.dimension_semantics<parallel>], iteration_bounds = array<i64: 1>, scalar_prefetch = 0 : i64, scratch_operands = 0 : i64, tpu.core_type = #tpu.core_type<tc>, window_params = [{transform_indices = @transform_0, window_bounds = array<i64: 8, 128>}, {pipeline_mode = #tpu.pipeline_mode<synchronous>, transform_indices = @transform_1, window_bounds = array<i64: 128, 128>}, {pipeline_mode = #tpu.pipeline_mode<synchronous>, transform_indices = @transform_2, window_bounds = array<i64: 1, 128>}, {pipeline_mode = #tpu.pipeline_mode<synchronous>, transform_indices = @transform_3, window_bounds = array<i64: 128, 128>}, {pipeline_mode = #tpu.pipeline_mode<synchronous>, transform_indices = @transform_4, window_bounds = array<i64: 1, 128>}, {transform_indices = @transform_5, window_bounds = array<i64: 8, 128>}]} {
    %c0 = arith.constant 0 : index
    %c0_0 = arith.constant 0 : index
    %0 = vector.load %arg1[%c0, %c0_0] : memref<8x128xbf16, #tpu.memory_space<vmem>>, vector<8x128xbf16>
    %c0_1 = arith.constant 0 : index
    %c0_2 = arith.constant 0 : index
    %1 = vector.load %arg2[%c0_1, %c0_2] : memref<128x128xbf16, #tpu.memory_space<vmem>>, vector<128x128xbf16>
    %cst = arith.constant dense<0.000000e+00> : vector<8x128xf32>
    %2 = tpu.matmul %0, %1, %cst {dimension_numbers = #tpu.dot_dimension_numbers<[1], [0], [0], [1], [0, 0, 1, 1], [], []>} : vector<8x128xbf16>, vector<128x128xbf16>, vector<8x128xf32> -> vector<8x128xf32>
    %c0_3 = arith.constant 0 : index
    %c0_4 = arith.constant 0 : index
    %3 = vector.load %arg3[%c0_3, %c0_4] : memref<1x128xf32, #tpu.memory_space<vmem>>, vector<1x128xf32>
    %4 = vector.broadcast %3 : vector<1x128xf32> to vector<8x128xf32>
    %5 = arith.addf %2, %4 : vector<8x128xf32>
    %cst_5 = arith.constant 0.000000e+00 : f32
    %6 = vector.broadcast %cst_5 : f32 to vector<8x128xf32>
    %7 = arith.maximumf %5, %6 : vector<8x128xf32>
    %8 = arith.truncf %7 : vector<8x128xf32> to vector<8x128xbf16>
    %c0_6 = arith.constant 0 : index
    %c0_7 = arith.constant 0 : index
    %9 = vector.load %arg4[%c0_6, %c0_7] : memref<128x128xbf16, #tpu.memory_space<vmem>>, vector<128x128xbf16>
    %cst_8 = arith.constant dense<0.000000e+00> : vector<8x128xf32>
    %10 = tpu.matmul %8, %9, %cst_8 {dimension_numbers = #tpu.dot_dimension_numbers<[1], [0], [0], [1], [0, 0, 1, 1], [], []>} : vector<8x128xbf16>, vector<128x128xbf16>, vector<8x128xf32> -> vector<8x128xf32>
    %c0_9 = arith.constant 0 : index
    %c0_10 = arith.constant 0 : index
    %11 = vector.load %arg5[%c0_9, %c0_10] : memref<1x128xf32, #tpu.memory_space<vmem>>, vector<1x128xf32>
    %12 = vector.broadcast %11 : vector<1x128xf32> to vector<8x128xf32>
    %13 = arith.addf %10, %12 : vector<8x128xf32>
    %c0_11 = arith.constant 0 : index
    %c0_12 = arith.constant 0 : index
    %14 = vector.load %arg6[%c0_11, %c0_12] : memref<8x128xf32, #tpu.memory_space<vmem>>, vector<8x128xf32>
    tpu.vector_store %arg6[%c0_11, %c0_12], %13 {strides = array<i32>} : memref<8x128xf32, #tpu.memory_space<vmem>>, vector<8x128xf32>,
    return
  }
  func.func @transform_0(%arg0: i32) -> (i32, i32) {
    %c0_i32 = arith.constant 0 : i32
    %c0_i32_0 = arith.constant 0 : i32
    return %arg0, %c0_i32 : i32, i32
  }
  func.func @transform_1(%arg0: i32) -> (i32, i32) {
    %c0_i32 = arith.constant 0 : i32
    %c0_i32_0 = arith.constant 0 : i32
    %c0_i32_1 = arith.constant 0 : i32
    return %c0_i32, %c0_i32_0 : i32, i32
  }
  func.func @transform_2(%arg0: i32) -> (i32, i32) {
    %c0_i32 = arith.constant 0 : i32
    %c0_i32_0 = arith.constant 0 : i32
    %c0_i32_1 = arith.constant 0 : i32
    return %c0_i32, %c0_i32_0 : i32, i32
  }
  func.func @transform_3(%arg0: i32) -> (i32, i32) {
    %c0_i32 = arith.constant 0 : i32
    %c0_i32_0 = arith.constant 0 : i32
    %c0_i32_1 = arith.constant 0 : i32
    return %c0_i32, %c0_i32_0 : i32, i32
  }
  func.func @transform_4(%arg0: i32) -> (i32, i32) {
    %c0_i32 = arith.constant 0 : i32
    %c0_i32_0 = arith.constant 0 : i32
    %c0_i32_1 = arith.constant 0 : i32
    return %c0_i32, %c0_i32_0 : i32, i32
  }
  func.func @transform_5(%arg0: i32) -> (i32, i32) {
    %c0_i32 = arith.constant 0 : i32
    %c0_i32_0 = arith.constant 0 : i32
    return %arg0, %c0_i32 : i32, i32
  }
}

</mosaic_0001>

<llo_original>
// kernel: tpu_custom_call.1
$region0: #{tpu_custom_call.1}
  #allocation0 [shape = 'u32[]', space=smem, size = 0x4, offset = 0x4, fixed_abs, tag = 'smem constant byte address 0x4 - core index']
  #allocation1 [shape = 'u32[144,128]{1,0:T(1,128)}', space=vmem, size = 0x12000, scoped, tag = 'internal scratch']
  %s0 = inlined_call_operand.hbm [shape: bf16[8,128], index: 0, kind: input, shape index: {}]
  %s1 = inlined_call_operand.hbm [shape: bf16[128,128], index: 1, kind: input, shape index: {}]
  %s2 = inlined_call_operand.vmem [shape: f32[1,128], index: 2, kind: input, shape index: {}]
  %s3 = inlined_call_operand.hbm [shape: bf16[128,128], index: 3, kind: input, shape index: {}]
  %s4 = inlined_call_operand.vmem [shape: f32[1,128], index: 4, kind: input, shape index: {}]
  %s5 = inlined_call_operand.hbm [shape: f32[8,128], index: 5, kind: output, shape index: {}]
  %s6 = sld [smem:[#allocation0]]
  $region42: #{tpu_custom_call.1} parent=0
    _
  %s8 = ssub.s32 1, %s6
  %s9 = scalar_select 0, %s8, %s6
  $region1: #{tpu_custom_call.1} parent=0
    #allocation2 [shape = 'u8[2048]{0}', space=vmem, size = 0x800, scoped, tag = 'input window, operand 0, single buffered']
    #allocation3 [shape = 's32[1]{0}', space=sflag, size = 0x4, scoped, tag = 'scoped memory for tpu_custom_call.1']
    #allocation4 [shape = 's32[1]{0}', space=sflag, size = 0x4, scoped, tag = 'scoped memory for tpu_custom_call.1']
    #allocation5 [shape = 'u8[32768]{0}', space=vmem, size = 0x8000, scoped, tag = 'input window, operand 1, single buffered']
    #allocation6 [shape = 's32[1]{0}', space=sflag, size = 0x4, scoped, tag = 'scoped memory for tpu_custom_call.1']
    #allocation7 [shape = 'u8[32768]{0}', space=vmem, size = 0x8000, scoped, tag = 'input window, operand 3, single buffered']
    #allocation8 [shape = 'u8[4096]{0}', space=vmem, size = 0x1000, scoped, tag = 'output window, operand 0, single buffered']
    %10 = vsyncpa [#allocation3], 0
    %11 = vsyncpa [#allocation6], 0
    %12 = vsyncpa [#allocation4], 0
    // Predicated region
    $region2: #{tpu_custom_call.1} parent=1 // pred_check
      _
    $region3: #{tpu_custom_call.1} parent=1 // pred_check_branch
      %14 = sbr.rel (0) target = $region5
    $region4: #{tpu_custom_call.1} parent=1 // pred_region
      %s16 = ssub.s32 64, 64
      %17 = vsyncadd [#allocation3], %s16
      %s19 = sshll.u32 [#allocation2], 4
      %s20 = int_to_ptr.vmem [resolvable:$true] %s19
      %22 = dma.hbm_to_vmem [thread:$0]  %s0, 64, %s20, [#allocation3]
    $region5: #{tpu_custom_call.1} parent=1 // pred_fallthru
      _
    // Predicated region
    $region6: #{tpu_custom_call.1} parent=1 // pred_check
      _
    $region7: #{tpu_custom_call.1} parent=1 // pred_check_branch
      %24 = sbr.rel (0) target = $region9
    $region8: #{tpu_custom_call.1} parent=1 // pred_region
      %s26 = ssub.s32 1024, 1024
      %27 = vsyncadd [#allocation6], %s26
      %s28 = sshll.u32 [#allocation5], 4
      %s29 = int_to_ptr.vmem [resolvable:$true] %s28
      %34 = dma.hbm_to_vmem [thread:$0]  %s1, 1024, %s29, [#allocation6], 64, 64, 4
    $region9: #{tpu_custom_call.1} parent=1 // pred_fallthru
      _
    // Predicated region
    $region10: #{tpu_custom_call.1} parent=1 // pred_check
      _
    $region11: #{tpu_custom_call.1} parent=1 // pred_check_branch
      %36 = sbr.rel (0) target = $region13
    $region12: #{tpu_custom_call.1} parent=1 // pred_region
      _
    $region13: #{tpu_custom_call.1} parent=1 // pred_fallthru
      _
    // Predicated region
    $region14: #{tpu_custom_call.1} parent=1 // pred_check
      _
    $region15: #{tpu_custom_call.1} parent=1 // pred_check_branch
      %38 = sbr.rel (0) target = $region17
    $region16: #{tpu_custom_call.1} parent=1 // pred_region
      %s40 = ssub.s32 1024, 1024
      %41 = vsyncadd [#allocation6], %s40
      %s42 = sshll.u32 [#allocation7], 4
      %s43 = int_to_ptr.vmem [resolvable:$true] %s42
      %48 = dma.hbm_to_vmem [thread:$0]  %s3, 1024, %s43, [#allocation6], 64, 64, 4
    $region17: #{tpu_custom_call.1} parent=1 // pred_fallthru
      _
    // Predicated region
    $region18: #{tpu_custom_call.1} parent=1 // pred_check
      _
    $region19: #{tpu_custom_call.1} parent=1 // pred_check_branch
      %50 = sbr.rel (0) target = $region21
    $region20: #{tpu_custom_call.1} parent=1 // pred_region
      _
    $region21: #{tpu_custom_call.1} parent=1 // pred_fallthru
      _
    // Predicated region
    $region22: #{tpu_custom_call.1} parent=1 // pred_check
      _
    $region23: #{tpu_custom_call.1} parent=1 // pred_check_branch
      %52 = sbr.rel (0) target = $region25
    $region24: #{tpu_custom_call.1} parent=1 // pred_region
      %53 = dma.done [#allocation3], 64
    $region25: #{tpu_custom_call.1} parent=1 // pred_fallthru
      _
    // Predicated region
    $region26: #{tpu_custom_call.1} parent=1 // pred_check
      _
    $region27: #{tpu_custom_call.1} parent=1 // pred_check_branch
      %55 = sbr.rel (0) target = $region29
    $region28: #{tpu_custom_call.1} parent=1 // pred_region
      %56 = dma.done [#allocation6], 1024
    $region29: #{tpu_custom_call.1} parent=1 // pred_fallthru
      _
    // Predicated region
    $region30: #{tpu_custom_call.1} parent=1 // pred_check
      _
    $region31: #{tpu_custom_call.1} parent=1 // pred_check_branch
      %58 = sbr.rel (0) target = $region33
    $region32: #{tpu_custom_call.1} parent=1 // pred_region
      %59 = dma.done [#allocation6], 1024
    $region33: #{tpu_custom_call.1} parent=1 // pred_fallthru
      _
    %v61 = vld [vmem:[#allocation2] sm:$0xf]
    %v62 = vld [vmem:[#allocation5] sm:$0xf]
    %v63 = vld [vmem:[#allocation5 + $0x4] sm:$0xf]
    %v64 = vld [vmem:[#allocation5 + $0x8] sm:$0xf]
    %v65 = vld [vmem:[#allocation5 + $0xc] sm:$0xf]
    %v66 = vld [vmem:[#allocation5 + $0x10] sm:$0xf]
    %v67 = vld [vmem:[#allocation5 + $0x14] sm:$0xf]
    %v68 = vld [vmem:[#allocation5 + $0x18] sm:$0xf]
    %v69 = vld [vmem:[#allocation5 + $0x1c] sm:$0xf]
    %v70 = vld [vmem:[#allocation5 + $0x20] sm:$0xf]
    %v71 = vld [vmem:[#allocation5 + $0x24] sm:$0xf]
    %v72 = vld [vmem:[#allocation5 + $0x28] sm:$0xf]
    %v73 = vld [vmem:[#allocation5 + $0x2c] sm:$0xf]
    %v74 = vld [vmem:[#allocation5 + $0x30] sm:$0xf]
    %v75 = vld [vmem:[#allocation5 + $0x34] sm:$0xf]
    %v76 = vld [vmem:[#allocation5 + $0x38] sm:$0xf]
    %v77 = vld [vmem:[#allocation5 + $0x3c] sm:$0xf]
    %v78 = vld [vmem:[%s2] sm:$0x1]
    %v80 = vlaneseq
    %v81 = vshrl.u32 %v80, 7
    %v82 = vsub.s32 0, %v81
    %v83 = vrot.slane %v78, %v82
    %v101 = vunpack.c.l.b16 %v62
    %v102 = vunpack.c.l.b16 %v63
    %v103 = vunpack.c.l.b16 %v64
    %v104 = vunpack.c.l.b16 %v65
    %v105 = vunpack.c.l.b16 %v66
    %v106 = vunpack.c.l.b16 %v67
    %v107 = vunpack.c.l.b16 %v68
    %v108 = vunpack.c.l.b16 %v69
    %v109 = vunpack.c.l.b16 %v70
    %v110 = vunpack.c.l.b16 %v71
    %v111 = vunpack.c.l.b16 %v72
    %v112 = vunpack.c.l.b16 %v73
    %v113 = vunpack.c.l.b16 %v74
    %v114 = vunpack.c.l.b16 %v75
    %v115 = vunpack.c.l.b16 %v76
    %v116 = vunpack.c.l.b16 %v77
    %v117 = vpack.c.b16 %v102, %v101
    %v118 = vpack.c.b16 %v104, %v103
    %v119 = vpack.c.b16 %v106, %v105
    %v120 = vpack.c.b16 %v108, %v107
    %v121 = vpack.c.b16 %v110, %v109
    %v122 = vpack.c.b16 %v112, %v111
    %v123 = vpack.c.b16 %v114, %v113
    %v124 = vpack.c.b16 %v116, %v115
    %133 = vmatprep.subr.bf16.mxu0 0
    %134 = vmatpush1.bf16.msra.mxu0 %v117
    %135 = vmatprep.subr.bf16.mxu0 0
    %136 = vmatpush1.bf16.msra.mxu0 %v118
    %137 = vmatprep.subr.bf16.mxu0 0
    %138 = vmatpush1.bf16.msra.mxu0 %v119
    %139 = vmatprep.subr.bf16.mxu0 0
    %140 = vmatpush1.bf16.msra.mxu0 %v120
    %141 = vmatprep.subr.bf16.mxu0 0
    %142 = vmatpush1.bf16.msra.mxu0 %v121
    %143 = vmatprep.subr.bf16.mxu0 0
    %144 = vmatpush1.bf16.msra.mxu0 %v122
    %145 = vmatprep.subr.bf16.mxu0 0
    %146 = vmatpush1.bf16.msra.mxu0 %v123
    %147 = vmatprep.subr.bf16.mxu0 0
    %148 = vmatpush1.bf16.msra.mxu0 %v124
    %149 = vmatprep.subr.bf16.mxu0 0
    %150 = vmatpush1.bf16.msra.mxu0 0
    %151 = vmatprep.subr.bf16.mxu0 0
    %152 = vmatpush1.bf16.msra.mxu0 0
    %153 = vmatprep.subr.bf16.mxu0 0
    %154 = vmatpush1.bf16.msra.mxu0 0
    %155 = vmatprep.subr.bf16.mxu0 0
    %156 = vmatpush1.bf16.msra.mxu0 0
    %157 = vmatprep.subr.bf16.mxu0 0
    %158 = vmatpush1.bf16.msra.mxu0 0
    %159 = vmatprep.subr.bf16.mxu0 0
    %160 = vmatpush1.bf16.msra.mxu0 0
    %161 = vmatprep.subr.bf16.mxu0 0
    %162 = vmatpush1.bf16.msra.mxu0 0
    %163 = vmatprep.subr.bf16.mxu0 0
    %164 = vmatpush1.bf16.msra.mxu0 0
    %165 = vmatprep.mubr.bf16.mxu0 0
    %166 = vmatmul.mubr.bf16.gmra.mrb[0].mxu0 %v61
    %v167 = vpop.f32.mrb[0].mxu0
    %v168 = vadd.f32 %v83, %v167
    %v169 = vpop.f32.mrb[0].mxu0
    %v170 = vpop.f32.mrb[0].mxu0
    %v171 = vpop.f32.mrb[0].mxu0
    %172 = vdwg.mxu0
    %v173 = vmax.f32 %v168, 0.0
    %v174 = vpack.c.bf16 %v173, %v173
    %v175 = vld [vmem:[#allocation7] sm:$0xf]
    %v176 = vld [vmem:[#allocation7 + $0x4] sm:$0xf]
    %v177 = vld [vmem:[#allocation7 + $0x8] sm:$0xf]
    %v178 = vld [vmem:[#allocation7 + $0xc] sm:$0xf]
    %v179 = vld [vmem:[#allocation7 + $0x10] sm:$0xf]
    %v180 = vld [vmem:[#allocation7 + $0x14] sm:$0xf]
    %v181 = vld [vmem:[#allocation7 + $0x18] sm:$0xf]
    %v182 = vld [vmem:[#allocation7 + $0x1c] sm:$0xf]
    %v183 = vld [vmem:[#allocation7 + $0x20] sm:$0xf]
    %v184 = vld [vmem:[#allocation7 + $0x24] sm:$0xf]
    %v185 = vld [vmem:[#allocation7 + $0x28] sm:$0xf]
    %v186 = vld [vmem:[#allocation7 + $0x2c] sm:$0xf]
    %v187 = vld [vmem:[#allocation7 + $0x30] sm:$0xf]
    %v188 = vld [vmem:[#allocation7 + $0x34] sm:$0xf]
    %v189 = vld [vmem:[#allocation7 + $0x38] sm:$0xf]
    %v190 = vld [vmem:[#allocation7 + $0x3c] sm:$0xf]
    %v191 = vld [vmem:[%s4] sm:$0x1]
    %v193 = vlaneseq
    %v194 = vshrl.u32 %v193, 7
    %v195 = vsub.s32 0, %v194
    %v196 = vrot.slane %v191, %v195
    %v214 = vunpack.c.l.b16 %v175
    %v215 = vunpack.c.l.b16 %v176
    %v216 = vunpack.c.l.b16 %v177
    %v217 = vunpack.c.l.b16 %v178
    %v218 = vunpack.c.l.b16 %v179
    %v219 = vunpack.c.l.b16 %v180
    %v220 = vunpack.c.l.b16 %v181
    %v221 = vunpack.c.l.b16 %v182
    %v222 = vunpack.c.l.b16 %v183
    %v223 = vunpack.c.l.b16 %v184
    %v224 = vunpack.c.l.b16 %v185
    %v225 = vunpack.c.l.b16 %v186
    %v226 = vunpack.c.l.b16 %v187
    %v227 = vunpack.c.l.b16 %v188
    %v228 = vunpack.c.l.b16 %v189
    %v229 = vunpack.c.l.b16 %v190
    %v230 = vpack.c.b16 %v215, %v214
    %v231 = vpack.c.b16 %v217, %v216
    %v232 = vpack.c.b16 %v219, %v218
    %v233 = vpack.c.b16 %v221, %v220
    %v234 = vpack.c.b16 %v223, %v222
    %v235 = vpack.c.b16 %v225, %v224
    %v236 = vpack.c.b16 %v227, %v226
    %v237 = vpack.c.b16 %v229, %v228
    %246 = vmatprep.subr.bf16.mxu0 0
    %247 = vmatpush1.bf16.msra.mxu0 %v230
    %248 = vmatprep.subr.bf16.mxu0 0
    %249 = vmatpush1.bf16.msra.mxu0 %v231
    %250 = vmatprep.subr.bf16.mxu0 0
    %251 = vmatpush1.bf16.msra.mxu0 %v232
    %252 = vmatprep.subr.bf16.mxu0 0
    %253 = vmatpush1.bf16.msra.mxu0 %v233
    %254 = vmatprep.subr.bf16.mxu0 0
    %255 = vmatpush1.bf16.msra.mxu0 %v234
    %256 = vmatprep.subr.bf16.mxu0 0
    %257 = vmatpush1.bf16.msra.mxu0 %v235
    %258 = vmatprep.subr.bf16.mxu0 0
    %259 = vmatpush1.bf16.msra.mxu0 %v236
    %260 = vmatprep.subr.bf16.mxu0 0
    %261 = vmatpush1.bf16.msra.mxu0 %v237
    %262 = vmatprep.subr.bf16.mxu0 0
    %263 = vmatpush1.bf16.msra.mxu0 0
    %264 = vmatprep.subr.bf16.mxu0 0
    %265 = vmatpush1.bf16.msra.mxu0 0
    %266 = vmatprep.subr.bf16.mxu0 0
    %267 = vmatpush1.bf16.msra.mxu0 0
    %268 = vmatprep.subr.bf16.mxu0 0
    %269 = vmatpush1.bf16.msra.mxu0 0
    %270 = vmatprep.subr.bf16.mxu0 0
    %271 = vmatpush1.bf16.msra.mxu0 0
    %272 = vmatprep.subr.bf16.mxu0 0
    %273 = vmatpush1.bf16.msra.mxu0 0
    %274 = vmatprep.subr.bf16.mxu0 0
    %275 = vmatpush1.bf16.msra.mxu0 0
    %276 = vmatprep.subr.bf16.mxu0 0
    %277 = vmatpush1.bf16.msra.mxu0 0
    %278 = vmatprep.mubr.bf16.mxu0 0
    %279 = vmatmul.mubr.bf16.gmra.mrb[0].mxu0 %v174
    %v280 = vpop.f32.mrb[0].mxu0
    %v281 = vadd.f32 %v196, %v280
    %v282 = vpop.f32.mrb[0].mxu0
    %v283 = vpop.f32.mrb[0].mxu0
    %v284 = vpop.f32.mrb[0].mxu0
    %285 = vdwg.mxu0
    %286 = vst [vmem:[#allocation8] sm:$0xff] %v281
    // Predicated region
    $region34: #{tpu_custom_call.1} parent=1 // pred_check
      _
    $region35: #{tpu_custom_call.1} parent=1 // pred_check_branch
      %288 = sbr.rel (0) target = $region37
    $region36: #{tpu_custom_call.1} parent=1 // pred_region
      %s290 = ssub.s32 128, 128
      %291 = vsyncadd [#allocation4], %s290
      %s293 = sshll.u32 [#allocation8], 4
      %s294 = int_to_ptr.vmem [resolvable:$true] %s293
      %296 = dma.vmem_to_hbm [thread:$0]  %s294, 128, %s5, [#allocation4]
    $region37: #{tpu_custom_call.1} parent=1 // pred_fallthru
      _
    // Predicated region
    $region38: #{tpu_custom_call.1} parent=1 // pred_check
      _
    $region39: #{tpu_custom_call.1} parent=1 // pred_check_branch
      %298 = sbr.rel (0) target = $region41
    $region40: #{tpu_custom_call.1} parent=1 // pred_region
      %299 = dma.done [#allocation4], 128
    $region41: #{tpu_custom_call.1} parent=1 // pred_fallthru
      _
    %300 = vsyncpa [#allocation3], 1
    %301 = vsyncpa [#allocation6], 1
    %302 = vsyncpa [#allocation4], 1

</llo_original>
